<compile_context>
chip_gen: v5e
topology: v5e:2x2
jax: 0.10.0
libtpu: 0.0.40
codegen_flags: <defaults>
</compile_context>

<pallas_src>
import numpy as np
import jax
import jax.numpy as jnp
from jax.experimental import pallas as pl
from jax.experimental.pallas import tpu as pltpu


# ---------------------------------------------------------------------------
# Deterministic parameter construction (port of gen_color, 'RAINBOW', n=10).
# ---------------------------------------------------------------------------
def gen_color_np(colors='RAINBOW', n=10):
    def crange(c1, c2, insert_n=10):
        clist = [np.linspace(c1[i], c2[i], insert_n) for i in range(3)]
        return np.vstack(clist).transpose()

    if isinstance(colors, np.ndarray):
        pass
    elif colors is None or colors == 'RAINBOW':
        colors = np.array([[255, 0, 0], [255, 127, 0], [240, 255, 0], [0, 255, 0],
                           [0, 30, 255], [75, 0, 130], [148, 0, 211]]) / 255.0
    elif colors == 'RAINBOW2':
        colors = np.array([[255, 0, 0], [255, 127, 0], [240, 255, 0], [0, 255, 0],
                           [0, 30, 255], [75, 0, 130], [148, 0, 211]]) / 255.0 * 0.5
    elif colors == 'K':
        colors = np.array([[0, 0, 0], [0, 0, 0]]) / 255.0
    elif colors == 'G':
        colors = np.array([[117, 249, 76], [117, 249, 76]]) / 255.0
    elif colors == 'U':
        colors = np.array([[0, 255, 0], [0, 0, 255]]) / 255.0
    elif colors == 'V':
        colors = np.array([[0, 255, 0], [255, 0, 0]]) / 255.0
    elif colors == 'RB':
        assert n % 2 == 0
        r = np.array([[255, 0, 0], [255, 200, 200]]) / 255.0
        b = np.array([[0, 0, 255], [200, 200, 255]]) / 255.0
        return np.concatenate([gen_color_np(r, n=n // 2), gen_color_np(b, n=n // 2)])

    c = len(colors)
    ln = (n * 10 - 1) // (c - 1) + 1
    linear_color = []
    for i in range(c - 1):
        li = crange(colors[i], colors[i + 1], ln)
        linear_color.append(li[1:] if i else li)
    linear_color = np.concatenate(linear_color, axis=0)
    index = np.linspace(0, len(linear_color) - 1, n).astype(int)
    return linear_color[index]  # (n, 3)


# ---------------------------------------------------------------------------
# Pallas kernel: colormap baked in as compile-time constants, zero terms
# pruned at trace time (pure VPU work, no MXU, no XLU, no transcendentals).
# ---------------------------------------------------------------------------
def make_heatmap_kernel(cmap_np):
    """cmap_np: (3, NC) colormap; returns (kernel(x_ref, o_ref), flops_per_elem)."""
    cmap = np.asarray(cmap_np, dtype=np.float64)
    nc = cmap.shape[1]
    last = float(nc - 1)
    base = [float(cmap[c, 0]) for c in range(3)]
    delta = [[float(cmap[c, j] - cmap[c, j - 1]) for j in range(1, nc)]
             for c in range(3)]

    # Trace-time pruning bookkeeping.
    active_j = [j for j in range(nc - 1)
                if any(delta[c][j] != 0.0 for c in range(3))]
    nz_terms = sum(1 for c in range(3) for j in active_j if delta[c][j] != 0.0)
    nz_bases = sum(1 for c in range(3) if base[c] != 0.0)
    # s = last*x (1), per active j: sub + clamp(2) = 3, per nonzero delta:
    # mul(+add) <= 2, per nonzero base: 1.  Advisory estimate only.
    flops_per_elem = 1 + 3 * len(active_j) + 2 * nz_terms + nz_bases

    def kernel(x_ref, o_ref):
        # x_ref: (1, ROWS, 128) input; o_ref: (1, 3, ROWS, 128) RGB output.
        x = x_ref[0]                                  # (ROWS, 128)
        # pos = (1 - x) * last, folded into the ramps:
        #   t_j = clamp(pos - j, 0, 1) = clamp((last - j) - last*x, 0, 1)
        s = last * x
        r = [None, None, None]
        for j in active_j:                            # fully unrolled, pruned
            t = jnp.clip((last - float(j)) - s, 0.0, 1.0)   # shared across channels
            for c in range(3):
                d = delta[c][j]
                if d == 0.0:
                    continue                          # pruned at trace time
                term = d * t
                r[c] = term if r[c] is None else r[c] + term
        for c in range(3):
            acc = r[c]
            if acc is None:                           # completely flat channel
                acc = jnp.full_like(x, base[c])
            elif base[c] != 0.0:
                acc = acc + base[c]
            o_ref[0, c, :, :] = acc.astype(o_ref.dtype)

    return kernel, flops_per_elem


def plot_heat_map(x, cmap_np, *, max_rows=1024):
    """x: (N, 1, H, W) float32; cmap_np: (3, NC) -> (N, 3, H, W) float32."""
    N, C, H, W = x.shape
    assert C == 1
    L = H * W
    lanes = 128

    # Lane-dense packing: pad the flattened spatial dim to a multiple of 128.
    L_pad = -(-L // lanes) * lanes
    R = L_pad // lanes

    # Row tile: multiple of 8, at most max_rows (ceil-div grid, no divisor hunt).
    rows = max(8, min(max_rows - max_rows % 8, -(-R // 8) * 8))
    # Ensure enough parallel grid points for multi-TC chips (v7x has 2 TCs).
    while rows > 8 and N * (-(-R // rows)) < 8:
        half = rows // 2
        rows = max(8, half - half % 8)

    R_pad = -(-R // rows) * rows
    grid_r = R_pad // rows

    xf = x.reshape(N, L)
    pad = R_pad * lanes - L
    if pad:
        xf = jnp.pad(xf, ((0, 0), (0, pad)))
    xr = xf.reshape(N, R_pad, lanes)

    kernel, flops_per_elem = make_heatmap_kernel(cmap_np)

    # Tight VMEM budget: double-buffered 1-in + 3-out tiles (~8 tiles) plus
    # headroom; never request the full 64 MiB of v7x.
    tile_bytes = rows * lanes * 4
    vmem_limit = int(min(48 << 20, max(16 << 20, 10 * tile_bytes + (4 << 20))))

    elems = N * R_pad * lanes
    out = pl.pallas_call(
        kernel,
        out_shape=jax.ShapeDtypeStruct((N, 3, R_pad, lanes), x.dtype),
        grid_spec=pltpu.PrefetchScalarGridSpec(
            num_scalar_prefetch=0,
            grid=(N, grid_r),
            in_specs=[pl.BlockSpec((1, rows, lanes), lambda n, r: (n, r, 0))],
            out_specs=pl.BlockSpec((1, 3, rows, lanes), lambda n, r: (n, 0, r, 0)),
        ),
        compiler_params=pltpu.CompilerParams(
            dimension_semantics=("parallel", "parallel"),
            vmem_limit_bytes=vmem_limit),
        cost_estimate=pl.CostEstimate(
            flops=flops_per_elem * elems, transcendentals=0,
            bytes_accessed=16 * elems),
    )(xr)
    # Drop spatial padding and restore (N, 3, H, W).
    out = out.reshape(N, 3, R_pad * lanes)[:, :, :L].reshape(N, 3, H, W)
    return out


# ---------------------------------------------------------------------------
# Pure-numpy reference of the grid_sample-equivalent 2-tap lookup.
# ---------------------------------------------------------------------------
def _reference(x, cmap_np):
    nc = cmap_np.shape[1]
    x_np = np.asarray(x)[:, 0]                               # (N, H, W)
    pos = np.clip((1.0 - x_np) * (nc - 1), 0.0, nc - 1)
    x0 = np.floor(pos).astype(np.int32)
    x1 = np.minimum(x0 + 1, nc - 1)
    frac = (pos - x0).astype(np.float32)
    ref = cmap_np[:, x0] * (1.0 - frac) + cmap_np[:, x1] * frac  # (3, N, H, W)
    return np.transpose(ref, (1, 0, 2, 3))                       # (N, 3, H, W)


if __name__ == "__main__":
    # Deterministic parameters (PlotHeatMap(color='RAINBOW') buffer; only the
    # (3, 10) colormap matters since the two H-rows are identical copies).
    cmap_np = gen_color_np('RAINBOW', n=10).T.astype(np.float32)  # (3, 10)

    # Deterministic input in [0, 1], shape (N, 1, H, W).
    key = jax.random.PRNGKey(0)
    x = jax.random.uniform(key, (2, 1, 16, 16), dtype=jnp.float32)

    out = plot_heat_map(x, cmap_np)
    out = jax.block_until_ready(out)
    np.testing.assert_allclose(np.asarray(out), _reference(x, cmap_np),
                               rtol=1e-5, atol=1e-5)
    assert out.shape == (2, 3, 16, 16)

    # Also exercise the non-128-multiple spatial path (pad + slice).
    x2 = jax.random.uniform(jax.random.PRNGKey(1), (1, 1, 10, 13),
                            dtype=jnp.float32)
    out2 = jax.block_until_ready(plot_heat_map(x2, cmap_np))
    np.testing.assert_allclose(np.asarray(out2), _reference(x2, cmap_np),
                               rtol=1e-5, atol=1e-5)
    assert out2.shape == (1, 3, 10, 13)

    print("KERNEL_OK")
</pallas_src>

<mosaic_0001>
module attributes {stable_mosaic.version = 11 : i64} {
  func.func @kernel(%arg0: i32, %arg1: i32, %arg2: memref<1x8x128xf32, #tpu.memory_space<vmem>>, %arg3: memref<1x3x8x128xf32, #tpu.memory_space<vmem>>) attributes {dimension_semantics = [#tpu.dimension_semantics<parallel>, #tpu.dimension_semantics<parallel>], iteration_bounds = array<i64: 2, 1>, scalar_prefetch = 0 : i64, scratch_operands = 0 : i64, tpu.core_type = #tpu.core_type<tc>, window_params = [{transform_indices = @transform_0, window_bounds = array<i64: 1, 8, 128>}, {transform_indices = @transform_1, window_bounds = array<i64: 1, 3, 8, 128>}]} {
    %c0 = arith.constant 0 : index
    %c0_0 = arith.constant 0 : index
    %c0_1 = arith.constant 0 : index
    %0 = vector.load %arg2[%c0, %c0_0, %c0_1] : memref<1x8x128xf32, #tpu.memory_space<vmem>>, vector<1x8x128xf32>
    %1 = vector.shape_cast %0 : vector<1x8x128xf32> to vector<8x128xf32>
    %cst = arith.constant 9.000000e+00 : f32
    %2 = vector.broadcast %cst : f32 to vector<8x128xf32>
    %3 = arith.mulf %2, %1 : vector<8x128xf32>
    %cst_2 = arith.constant 9.000000e+00 : f32
    %4 = vector.broadcast %cst_2 : f32 to vector<8x128xf32>
    %5 = arith.subf %4, %3 : vector<8x128xf32>
    %cst_3 = arith.constant 0.000000e+00 : f32
    %cst_4 = arith.constant 1.000000e+00 : f32
    %6 = vector.broadcast %cst_3 : f32 to vector<8x128xf32>
    %7 = arith.maximumf %6, %5 : vector<8x128xf32>
    %8 = vector.broadcast %cst_4 : f32 to vector<8x128xf32>
    %9 = arith.minimumf %8, %7 : vector<8x128xf32>
    %cst_5 = arith.constant 0.311274499 : f32
    %10 = vector.broadcast %cst_5 : f32 to vector<8x128xf32>
    %11 = arith.mulf %10, %9 : vector<8x128xf32>
    %cst_6 = arith.constant 8.000000e+00 : f32
    %12 = vector.broadcast %cst_6 : f32 to vector<8x128xf32>
    %13 = arith.subf %12, %3 : vector<8x128xf32>
    %cst_7 = arith.constant 0.000000e+00 : f32
    %cst_8 = arith.constant 1.000000e+00 : f32
    %14 = vector.broadcast %cst_7 : f32 to vector<8x128xf32>
    %15 = arith.maximumf %14, %13 : vector<8x128xf32>
    %16 = vector.broadcast %cst_8 : f32 to vector<8x128xf32>
    %17 = arith.minimumf %16, %15 : vector<8x128xf32>
    %cst_9 = arith.constant -0.0183823705 : f32
    %18 = vector.broadcast %cst_9 : f32 to vector<8x128xf32>
    %19 = arith.mulf %18, %17 : vector<8x128xf32>
    %cst_10 = arith.constant 0.343627483 : f32
    %20 = vector.broadcast %cst_10 : f32 to vector<8x128xf32>
    %21 = arith.mulf %20, %17 : vector<8x128xf32>
    %22 = arith.addf %11, %21 : vector<8x128xf32>
    %cst_11 = arith.constant 7.000000e+00 : f32
    %23 = vector.broadcast %cst_11 : f32 to vector<8x128xf32>
    %24 = arith.subf %23, %3 : vector<8x128xf32>
    %cst_12 = arith.constant 0.000000e+00 : f32
    %cst_13 = arith.constant 1.000000e+00 : f32
    %25 = vector.broadcast %cst_12 : f32 to vector<8x128xf32>
    %26 = arith.maximumf %25, %24 : vector<8x128xf32>
    %27 = vector.broadcast %cst_13 : f32 to vector<8x128xf32>
    %28 = arith.minimumf %27, %26 : vector<8x128xf32>
    %cst_14 = arith.constant -0.0404411554 : f32
    %29 = vector.broadcast %cst_14 : f32 to vector<8x128xf32>
    %30 = arith.mulf %29, %28 : vector<8x128xf32>
    %31 = arith.addf %19, %30 : vector<8x128xf32>
    %cst_15 = arith.constant 0.345098019 : f32
    %32 = vector.broadcast %cst_15 : f32 to vector<8x128xf32>
    %33 = arith.mulf %32, %28 : vector<8x128xf32>
    %34 = arith.addf %22, %33 : vector<8x128xf32>
    %cst_16 = arith.constant 6.000000e+00 : f32
    %35 = vector.broadcast %cst_16 : f32 to vector<8x128xf32>
    %36 = arith.subf %35, %3 : vector<8x128xf32>
    %cst_17 = arith.constant 0.000000e+00 : f32
    %cst_18 = arith.constant 1.000000e+00 : f32
    %37 = vector.broadcast %cst_17 : f32 to vector<8x128xf32>
    %38 = arith.maximumf %37, %36 : vector<8x128xf32>
    %39 = vector.broadcast %cst_18 : f32 to vector<8x128xf32>
    %40 = arith.minimumf %39, %38 : vector<8x128xf32>
    %cst_19 = arith.constant -0.588235259 : f32
    %41 = vector.broadcast %cst_19 : f32 to vector<8x128xf32>
    %42 = arith.mulf %41, %40 : vector<8x128xf32>
    %43 = arith.addf %31, %42 : vector<8x128xf32>
    %cst_20 = arith.constant 5.000000e+00 : f32
    %44 = vector.broadcast %cst_20 : f32 to vector<8x128xf32>
    %45 = arith.subf %44, %3 : vector<8x128xf32>
    %cst_21 = arith.constant 0.000000e+00 : f32
    %cst_22 = arith.constant 1.000000e+00 : f32
    %46 = vector.broadcast %cst_21 : f32 to vector<8x128xf32>
    %47 = arith.maximumf %46, %45 : vector<8x128xf32>
    %48 = vector.broadcast %cst_22 : f32 to vector<8x128xf32>
    %49 = arith.minimumf %48, %47 : vector<8x128xf32>
    %cst_23 = arith.constant -0.352941185 : f32
    %50 = vector.broadcast %cst_23 : f32 to vector<8x128xf32>
    %51 = arith.mulf %50, %49 : vector<8x128xf32>
    %52 = arith.addf %43, %51 : vector<8x128xf32>
    %cst_24 = arith.constant -0.275735319 : f32
    %53 = vector.broadcast %cst_24 : f32 to vector<8x128xf32>
    %54 = arith.mulf %53, %49 : vector<8x128xf32>
    %55 = arith.addf %34, %54 : vector<8x128xf32>
    %cst_25 = arith.constant 3.125000e-01 : f32
    %56 = vector.broadcast %cst_25 : f32 to vector<8x128xf32>
    %57 = arith.mulf %56, %49 : vector<8x128xf32>
    %cst_26 = arith.constant 4.000000e+00 : f32
    %58 = vector.broadcast %cst_26 : f32 to vector<8x128xf32>
    %59 = arith.subf %58, %3 : vector<8x128xf32>
    %cst_27 = arith.constant 0.000000e+00 : f32
    %cst_28 = arith.constant 1.000000e+00 : f32
    %60 = vector.broadcast %cst_27 : f32 to vector<8x128xf32>
    %61 = arith.maximumf %60, %59 : vector<8x128xf32>
    %62 = vector.broadcast %cst_28 : f32 to vector<8x128xf32>
    %63 = arith.minimumf %62, %61 : vector<8x128xf32>
    %cst_29 = arith.constant -0.606617629 : f32
    %64 = vector.broadcast %cst_29 : f32 to vector<8x128xf32>
    %65 = arith.mulf %64, %63 : vector<8x128xf32>
    %66 = arith.addf %55, %65 : vector<8x128xf32>
    %cst_30 = arith.constant 6.875000e-01 : f32
    %67 = vector.broadcast %cst_30 : f32 to vector<8x128xf32>
    %68 = arith.mulf %67, %63 : vector<8x128xf32>
    %69 = arith.addf %57, %68 : vector<8x128xf32>
    %cst_31 = arith.constant 3.000000e+00 : f32
    %70 = vector.broadcast %cst_31 : f32 to vector<8x128xf32>
    %71 = arith.subf %70, %3 : vector<8x128xf32>
    %cst_32 = arith.constant 0.000000e+00 : f32
    %cst_33 = arith.constant 1.000000e+00 : f32
    %72 = vector.broadcast %cst_32 : f32 to vector<8x128xf32>
    %73 = arith.maximumf %72, %71 : vector<8x128xf32>
    %74 = vector.broadcast %cst_33 : f32 to vector<8x128xf32>
    %75 = arith.minimumf %74, %73 : vector<8x128xf32>
    %cst_34 = arith.constant 0.183823526 : f32
    %76 = vector.broadcast %cst_34 : f32 to vector<8x128xf32>
    %77 = arith.mulf %76, %75 : vector<8x128xf32>
    %78 = arith.addf %52, %77 : vector<8x128xf32>
    %cst_35 = arith.constant -0.0735294074 : f32
    %79 = vector.broadcast %cst_35 : f32 to vector<8x128xf32>
    %80 = arith.mulf %79, %75 : vector<8x128xf32>
    %81 = arith.addf %66, %80 : vector<8x128xf32>
    %cst_36 = arith.constant -0.306372523 : f32
    %82 = vector.broadcast %cst_36 : f32 to vector<8x128xf32>
    %83 = arith.mulf %82, %75 : vector<8x128xf32>
    %84 = arith.addf %69, %83 : vector<8x128xf32>
    %cst_37 = arith.constant 2.000000e+00 : f32
    %85 = vector.broadcast %cst_37 : f32 to vector<8x128xf32>
    %86 = arith.subf %85, %3 : vector<8x128xf32>
    %cst_38 = arith.constant 0.000000e+00 : f32
    %cst_39 = arith.constant 1.000000e+00 : f32
    %87 = vector.broadcast %cst_38 : f32 to vector<8x128xf32>
    %88 = arith.maximumf %87, %86 : vector<8x128xf32>
    %89 = vector.broadcast %cst_39 : f32 to vector<8x128xf32>
    %90 = arith.minimumf %89, %88 : vector<8x128xf32>
    %cst_40 = arith.constant 0.199754894 : f32
    %91 = vector.broadcast %cst_40 : f32 to vector<8x128xf32>
    %92 = arith.mulf %91, %90 : vector<8x128xf32>
    %93 = arith.addf %78, %92 : vector<8x128xf32>
    %cst_41 = arith.constant -0.0441176482 : f32
    %94 = vector.broadcast %cst_41 : f32 to vector<8x128xf32>
    %95 = arith.mulf %94, %90 : vector<8x128xf32>
    %96 = arith.addf %81, %95 : vector<8x128xf32>
    %cst_42 = arith.constant -0.0845588446 : f32
    %97 = vector.broadcast %cst_42 : f32 to vector<8x128xf32>
    %98 = arith.mulf %97, %90 : vector<8x128xf32>
    %99 = arith.addf %84, %98 : vector<8x128xf32>
    %cst_43 = arith.constant 1.000000e+00 : f32
    %100 = vector.broadcast %cst_43 : f32 to vector<8x128xf32>
    %101 = arith.subf %100, %3 : vector<8x128xf32>
    %cst_44 = arith.constant 0.000000e+00 : f32
    %cst_45 = arith.constant 1.000000e+00 : f32
    %102 = vector.broadcast %cst_44 : f32 to vector<8x128xf32>
    %103 = arith.maximumf %102, %101 : vector<8x128xf32>
    %104 = vector.broadcast %cst_45 : f32 to vector<8x128xf32>
    %105 = arith.minimumf %104, %103 : vector<8x128xf32>
    %cst_46 = arith.constant 0.196813762 : f32
    %106 = vector.broadcast %cst_46 : f32 to vector<8x128xf32>
    %107 = arith.mulf %106, %105 : vector<8x128xf32>
    %108 = arith.addf %93, %107 : vector<8x128xf32>
    %cst_47 = arith.constant 0.218382359 : f32
    %109 = vector.broadcast %cst_47 : f32 to vector<8x128xf32>
    %110 = arith.mulf %109, %105 : vector<8x128xf32>
    %111 = arith.addf %99, %110 : vector<8x128xf32>
    %cst_48 = arith.constant 1.000000e+00 : f32
    %112 = vector.broadcast %cst_48 : f32 to vector<8x128xf32>
    %113 = arith.addf %108, %112 : vector<8x128xf32>
    %c0_49 = arith.constant 0 : index
    %c0_50 = arith.constant 0 : index
    %c0_51 = arith.constant 0 : index
    %c0_52 = arith.constant 0 : index
    %114 = vector.load %arg3[%c0_49, %c0_50, %c0_51, %c0_52] : memref<1x3x8x128xf32, #tpu.memory_space<vmem>>, vector<1x1x8x128xf32>
    %115 = vector.shape_cast %114 : vector<1x1x8x128xf32> to vector<8x128xf32>
    %116 = vector.shape_cast %113 : vector<8x128xf32> to vector<1x1x8x128xf32>
    tpu.vector_store %arg3[%c0_49, %c0_50, %c0_51, %c0_52], %116 {strides = array<i32>} : memref<1x3x8x128xf32, #tpu.memory_space<vmem>>, vector<1x1x8x128xf32>,
    %c0_53 = arith.constant 0 : index
    %c1 = arith.constant 1 : index
    %c0_54 = arith.constant 0 : index
    %c0_55 = arith.constant 0 : index
    %117 = vector.load %arg3[%c0_53, %c1, %c0_54, %c0_55] : memref<1x3x8x128xf32, #tpu.memory_space<vmem>>, vector<1x1x8x128xf32>
    %118 = vector.shape_cast %117 : vector<1x1x8x128xf32> to vector<8x128xf32>
    %119 = vector.shape_cast %96 : vector<8x128xf32> to vector<1x1x8x128xf32>
    tpu.vector_store %arg3[%c0_53, %c1, %c0_54, %c0_55], %119 {strides = array<i32>} : memref<1x3x8x128xf32, #tpu.memory_space<vmem>>, vector<1x1x8x128xf32>,
    %c0_56 = arith.constant 0 : index
    %c2 = arith.constant 2 : index
    %c0_57 = arith.constant 0 : index
    %c0_58 = arith.constant 0 : index
    %120 = vector.load %arg3[%c0_56, %c2, %c0_57, %c0_58] : memref<1x3x8x128xf32, #tpu.memory_space<vmem>>, vector<1x1x8x128xf32>
    %121 = vector.shape_cast %120 : vector<1x1x8x128xf32> to vector<8x128xf32>
    %122 = vector.shape_cast %111 : vector<8x128xf32> to vector<1x1x8x128xf32>
    tpu.vector_store %arg3[%c0_56, %c2, %c0_57, %c0_58], %122 {strides = array<i32>} : memref<1x3x8x128xf32, #tpu.memory_space<vmem>>, vector<1x1x8x128xf32>,
    return
  }
  func.func @transform_0(%arg0: i32, %arg1: i32) -> (i32, i32, i32) {
    %c0_i32 = arith.constant 0 : i32
    %c0_i32_0 = arith.constant 0 : i32
    return %arg0, %arg1, %c0_i32 : i32, i32, i32
  }
  func.func @transform_1(%arg0: i32, %arg1: i32) -> (i32, i32, i32, i32) {
    %c0_i32 = arith.constant 0 : i32
    %c0_i32_0 = arith.constant 0 : i32
    %c0_i32_1 = arith.constant 0 : i32
    return %arg0, %c0_i32, %arg1, %c0_i32_0 : i32, i32, i32, i32
  }
}

</mosaic_0001>

<llo_original>
// kernel: tpu_custom_call.1
$region0: #{tpu_custom_call.1}
  #allocation0 [shape = 'u32[]', space=smem, size = 0x4, offset = 0x4, fixed_abs, tag = 'smem constant byte address 0x4 - core index']
  #allocation1 [shape = 'u32[72,128]{1,0:T(1,128)}', space=vmem, size = 0x9000, scoped, tag = 'internal scratch']
  %s0 = inlined_call_operand.hbm [shape: f32[2,8,128], index: 0, kind: input, shape index: {}]
  %s1 = inlined_call_operand.hbm [shape: f32[2,3,8,128], index: 1, kind: output, shape index: {}]
  %s2 = sld [smem:[#allocation0]]
  $region41: #{tpu_custom_call.1} parent=0
    _
  %s4 = ssub.s32 1, %s2
  %s5 = scalar_select 0, %s4, %s2
  $region1: #{tpu_custom_call.1} parent=0
    #allocation2 [shape = 'u8[8192]{0}', space=vmem, size = 0x2000, scoped, tag = 'input window, operand 0']
    #allocation3 [shape = 's32[2]{0}', space=sflag, size = 0x8, scoped, tag = 'scoped memory for tpu_custom_call.1']
    #allocation4 [shape = 's32[2]{0}', space=sflag, size = 0x8, scoped, tag = 'scoped memory for tpu_custom_call.1']
    #allocation5 [shape = 'u8[24576]{0}', space=vmem, size = 0x6000, scoped, tag = 'output window, operand 0']
    %6 = vsyncpa [#allocation3], 0
    %s7 = scalar_lea.sflag [#allocation3], 1
    %8 = vsyncpa %s7, 0
    %9 = vsyncpa [#allocation4], 0
    %s10 = scalar_lea.sflag [#allocation4], 1
    %11 = vsyncpa %s10, 0
    loop: start=0, step=1, limit=4
    $region2: #{tpu_custom_call.1} parent=1 // loop_pre_header
      _
    $region3: #{tpu_custom_call.1} parent=1 // loop_header
      %s13 = sphi 0, %s17
      %p14 = scmp.ge.s32.totalorder %s13, 4
      %s20 = sphi 0, %s32
      %s21 = sphi 0, %s28
      %s22 = sphi 0, %s20
      %s23 = sphi 0, %s21
      %s24 = sphi 0, %s22
      %s25 = sphi 0, %s23
      %s37 = sphi 0, %s39
      %s40 = sphi 0, %s37
      %s41 = sphi 0, %s40
      %s57 = sphi 0, %s41
      %s65 = sphi 0, %s67
      %s68 = sphi 0, %s65
      %s69 = sphi 0, %s68
      %s85 = sphi 0, %s69
    $region4: #{tpu_custom_call.1} parent=1 // loop_header_branch
      %16 = sbr.rel (%p14) target = $region8
    $region5: #{tpu_custom_call.1} parent=1 // loop_body
      %s18 = ssub.s32 %s13, 1
      %s19 = ssub.s32 %s13, 2
      %s26 = sadd.s32 1, %s21
      %p27 = scmp.ge.s32.totalorder %s26, 1
      %s28 = scalar_select %p27, 0, %s26
      %s29 = sadd.s32 1, %s20
      %s30 = scalar_select %p27, %s29, %s20
      %p31 = scmp.ge.s32.totalorder %s30, 2
      %s32 = scalar_select %p31, 0, %s30
      %s33 = ssub.s32 %s20, %s32
      %s34 = ssub.s32 %s21, %s28
      %s35 = sor.u32 %s33, %s34
      %p36 = scmp.eq.s32.totalorder %s35, 0
      %s38 = sadd.s32 %s37, 1
      %s39 = scalar_select %p36, %s37, %s38
      %p42 = pneg %p36
      %p43 = scmp.eq.s32.totalorder %s13, 1
      %p44 = por %p42, %p43
      %p45 = scmp.ne.s32.totalorder %s37, %s40
      %p46 = scmp.eq.s32.totalorder %s13, 0
      %p47 = por %p45, %p46
      %p48 = scmp.ne.s32.totalorder %s37, %s40
      %p49 = scmp.eq.s32.totalorder %s18, 1
      %p50 = por %p48, %p49
      %p51 = scmp.ne.s32.totalorder %s40, %s41
      %p52 = scmp.eq.s32.totalorder %s18, 0
      %p53 = por %p51, %p52
      %p54 = scmp.ne.s32.totalorder %s40, %s41
      %p55 = scmp.eq.s32.totalorder %s19, 1
      %p56 = por %p54, %p55
      %p58 = scmp.ne.s32.totalorder %s41, %s57
      %p59 = scmp.eq.s32.totalorder %s19, 0
      %p60 = por %p58, %p59
      %s61 = ssub.s32 %s20, %s32
      %s62 = ssub.s32 %s21, %s28
      %s63 = sor.u32 %s61, %s62
      %p64 = scmp.eq.s32.totalorder %s63, 0
      %s66 = sadd.s32 %s65, 1
      %s67 = scalar_select %p64, %s65, %s66
      %p70 = pneg %p64
      %p71 = scmp.eq.s32.totalorder %s13, 1
      %p72 = por %p70, %p71
      %p73 = scmp.ne.s32.totalorder %s65, %s68
      %p74 = scmp.eq.s32.totalorder %s13, 0
      %p75 = por %p73, %p74
      %p76 = scmp.ne.s32.totalorder %s65, %s68
      %p77 = scmp.eq.s32.totalorder %s18, 1
      %p78 = por %p76, %p77
      %p79 = scmp.ne.s32.totalorder %s68, %s69
      %p80 = scmp.eq.s32.totalorder %s18, 0
      %p81 = por %p79, %p80
      %p82 = scmp.ne.s32.totalorder %s68, %s69
      %p83 = scmp.eq.s32.totalorder %s19, 1
      %p84 = por %p82, %p83
      %p86 = scmp.ne.s32.totalorder %s69, %s85
      %p87 = scmp.eq.s32.totalorder %s19, 0
      %p88 = por %p86, %p87
      %p89 = scmp.le.s32.totalorder 1, %s13
      %p90 = scmp.lt.s32.totalorder %s13, 3
      %p91 = pnand %p89, %p90
      %p92 = pneg %p91
      // Predicated region
      $region9: #{tpu_custom_call.1} parent=5 // pred_check
        _
      $region10: #{tpu_custom_call.1} parent=5 // pred_check_branch
        %94 = sbr.rel (%p91) target = $region12
      $region11: #{tpu_custom_call.1} parent=5 // pred_region
        %s95 = ssub.s32 %s13, 1
      $region12: #{tpu_custom_call.1} parent=5 // pred_fallthru
        _
      %p96 = scmp.lt.s32.totalorder %s13, 2
      // Predicated region
      $region13: #{tpu_custom_call.1} parent=5 // pred_check
        %p97 = pneg %p96
      $region14: #{tpu_custom_call.1} parent=5 // pred_check_branch
        %99 = sbr.rel (%p97) target = $region16
      $region15: #{tpu_custom_call.1} parent=5 // pred_region
        // Predicated region
        $region17: #{tpu_custom_call.1} parent=15 // pred_check
          %p100 = pneg %p47
        $region18: #{tpu_custom_call.1} parent=15 // pred_check_branch
          %102 = sbr.rel (%p100) target = $region20
        $region19: #{tpu_custom_call.1} parent=15 // pred_region
          %s103 = sand.u32 %s37, 1
          %s104 = scalar_lea.sflag [#allocation3], %s103
          %s105 = sand.u32 %s37, 1
          %s106 = smul.addr %s105, 8
          %s107 = scalar_lea.vmem [#allocation2], %s106
          %109 = vsyncadd %s104, 0
          %s110 = sadd.s32 %s21, %s20
          %s111 = smul.addr %s110, 8
          %s112 = scalar_lea.hbm %s0, %s111
          %s114 = sshll.u32 %s112, 4
          %s115 = int_to_ptr.hbm [resolvable:$true] %s114
          %s116 = sshll.u32 %s107, 4
          %s117 = int_to_ptr.vmem [resolvable:$true] %s116
          %119 = dma.hbm_to_vmem [thread:$0]  %s115, 128, %s117, %s104
        $region20: #{tpu_custom_call.1} parent=15 // pred_fallthru
          _
      $region16: #{tpu_custom_call.1} parent=5 // pred_fallthru
        _
      %p120 = scmp.le.s32.totalorder 1, %s13
      %p121 = scmp.lt.s32.totalorder %s13, 3
      %p122 = pnand %p120, %p121
      %p123 = pneg %p122
      // Predicated region
      $region21: #{tpu_custom_call.1} parent=5 // pred_check
        _
      $region22: #{tpu_custom_call.1} parent=5 // pred_check_branch
        %125 = sbr.rel (%p122) target = $region24
      $region23: #{tpu_custom_call.1} parent=5 // pred_region
        %s126 = ssub.s32 %s13, 1
        %s127 = sand.u32 %s40, 1
        %s128 = scalar_lea.sflag [#allocation3], %s127
        %s129 = sand.u32 %s40, 1
        %s130 = smul.addr %s129, 8
        %s131 = scalar_lea.vmem [#allocation2], %s130
        // Predicated region
        $region25: #{tpu_custom_call.1} parent=23 // pred_check
          %p132 = pneg %p53
        $region26: #{tpu_custom_call.1} parent=23 // pred_check_branch
          %134 = sbr.rel (%p132) target = $region28
        $region27: #{tpu_custom_call.1} parent=23 // pred_region
          %136 = dma.done %s128, 128
        $region28: #{tpu_custom_call.1} parent=23 // pred_fallthru
          _
        %s137 = sand.u32 %s40, 1
        %s138 = scalar_lea.sflag [#allocation3], %s137
        %s139 = sand.u32 %s40, 1
        %s140 = smul.addr %s139, 8
        %s141 = scalar_lea.vmem [#allocation2], %s140
        %p142 = pneg %p53
        %p143 = pneg %p50
        %p144 = pneg %p81
        %p145 = pneg %p78
        %s146 = sand.u32 %s68, 1
        %s147 = scalar_lea.sflag [#allocation4], %s146
        %s148 = sand.u32 %s68, 1
        %s149 = smul.addr %s148, 24
        %s150 = scalar_lea.vmem [#allocation5], %s149
        %v151 = vld [vmem:[%s131] sm:$0xff]
        %v152 = vmul.f32 %v151, 9.0
        %v153 = vsub.f32 9.0, %v152
        %v154 = vmax.f32 %v153, 0.0
        %v155 = vmin.f32 %v154, 1.0
        %v156 = vmul.f32 %v155, 0.3112745
        %v157 = vsub.f32 8.0, %v152
        %v158 = vmax.f32 %v157, 0.0
        %v159 = vmin.f32 %v158, 1.0
        %v160 = vmul.f32 %v159, -0.01838237
        %v161 = vmul.f32 %v159, 0.34362748
        %v162 = vadd.f32 %v156, %v161
        %v163 = vsub.f32 7.0, %v152
        %v164 = vmax.f32 %v163, 0.0
        %v165 = vmin.f32 %v164, 1.0
        %v166 = vmul.f32 %v165, -0.040441155
        %v167 = vadd.f32 %v160, %v166
        %v168 = vmul.f32 %v165, 0.34509802
        %v169 = vadd.f32 %v162, %v168
        %v170 = vsub.f32 6.0, %v152
        %v171 = vmax.f32 %v170, 0.0
        %v172 = vmin.f32 %v171, 1.0
        %v173 = vmul.f32 %v172, -0.58823526
        %v174 = vadd.f32 %v167, %v173
        %v175 = vsub.f32 5.0, %v152
        %v176 = vmax.f32 %v175, 0.0
        %v177 = vmin.f32 %v176, 1.0
        %v178 = vmul.f32 %v177, -0.3529412
        %v179 = vadd.f32 %v174, %v178
        %v180 = vmul.f32 %v177, -0.27573532
        %v181 = vadd.f32 %v169, %v180
        %v182 = vmul.f32 %v177, 0.3125
        %v183 = vsub.f32 4.0, %v152
        %v184 = vmax.f32 %v183, 0.0
        %v185 = vmin.f32 %v184, 1.0
        %v186 = vmul.f32 %v185, -0.6066176
        %v187 = vadd.f32 %v181, %v186
        %v188 = vmul.f32 %v185, 0.6875
        %v189 = vadd.f32 %v182, %v188
        %v190 = vsub.f32 3.0, %v152
        %v191 = vmax.f32 %v190, 0.0
        %v192 = vmin.f32 %v191, 1.0
        %v193 = vmul.f32 %v192, 0.18382353
        %v194 = vadd.f32 %v179, %v193
        %v195 = vmul.f32 %v192, -0.07352941
        %v196 = vadd.f32 %v187, %v195
        %v197 = vmul.f32 %v192, -0.30637252
        %v198 = vadd.f32 %v189, %v197
        %v199 = vsub.f32 2.0, %v152
        %v200 = vmax.f32 %v199, 0.0
        %v201 = vmin.f32 %v200, 1.0
        %v202 = vmul.f32 %v201, 0.1997549
        %v203 = vadd.f32 %v194, %v202
        %v204 = vmul.f32 %v201, -0.04411765
        %v205 = vadd.f32 %v196, %v204
        %v206 = vmul.f32 %v201, -0.084558845
        %v207 = vadd.f32 %v198, %v206
        %v208 = vsub.f32 1.0, %v152
        %v209 = vmax.f32 %v208, 0.0
        %v210 = vmin.f32 %v209, 1.0
        %v211 = vmul.f32 %v210, 0.19681376
        %v212 = vadd.f32 %v203, %v211
        %v213 = vmul.f32 %v210, 0.21838236
        %v214 = vadd.f32 %v207, %v213
        %v215 = vadd.f32 %v212, 1.0
        %216 = vst [vmem:[%s150] sm:$0xff] %v215
        %s217 = scalar_lea.vmem %s150, 8 [#allocation5]
        %218 = vst [vmem:[%s217] sm:$0xff] %v205
        %s219 = scalar_lea.vmem %s150, 16 [#allocation5]
        %220 = vst [vmem:[%s219] sm:$0xff] %v214
        %s221 = sand.u32 %s68, 1
        %s222 = scalar_lea.sflag [#allocation4], %s221
        %s223 = sand.u32 %s68, 1
        %s224 = smul.addr %s223, 24
        %s225 = scalar_lea.vmem [#allocation5], %s224
        // Predicated region
        $region29: #{tpu_custom_call.1} parent=23 // pred_check
          %p226 = pneg %p78
        $region30: #{tpu_custom_call.1} parent=23 // pred_check_branch
          %228 = sbr.rel (%p226) target = $region32
        $region31: #{tpu_custom_call.1} parent=23 // pred_region
          %230 = vsyncadd %s222, 0
          %s231 = smul.addr %s22, 3
          %s232 = sadd.s32 %s23, %s231
          %s233 = smul.addr %s232, 8
          %s234 = scalar_lea.hbm %s1, %s233
          %s235 = sshll.u32 %s225, 4
          %s236 = int_to_ptr.vmem [resolvable:$true] %s235
          %s237 = sshll.u32 %s234, 4
          %s238 = int_to_ptr.hbm [resolvable:$true] %s237
          %243 = dma.vmem_to_hbm [thread:$0]  %s236, 384, %s238, %s222, 128, 128, 8
        $region32: #{tpu_custom_call.1} parent=23 // pred_fallthru
          _
      $region24: #{tpu_custom_call.1} parent=5 // pred_fallthru
        _
      %p244 = scmp.le.s32.totalorder 2, %s13
      // Predicated region
      $region33: #{tpu_custom_call.1} parent=5 // pred_check
        %p245 = pneg %p244
      $region34: #{tpu_custom_call.1} parent=5 // pred_check_branch
        %247 = sbr.rel (%p245) target = $region36
      $region35: #{tpu_custom_call.1} parent=5 // pred_region
        %s248 = ssub.s32 %s13, 2
        // Predicated region
        $region37: #{tpu_custom_call.1} parent=35 // pred_check
          %p249 = pneg %p84
        $region38: #{tpu_custom_call.1} parent=35 // pred_check_branch
          %251 = sbr.rel (%p249) target = $region40
        $region39: #{tpu_custom_call.1} parent=35 // pred_region
          %s252 = sand.u32 %s69, 1
          %s253 = scalar_lea.sflag [#allocation4], %s252
          %s254 = sand.u32 %s69, 1
          %s255 = smul.addr %s254, 24
          %s256 = scalar_lea.vmem [#allocation5], %s255
          %258 = dma.done %s253, 384
        $region40: #{tpu_custom_call.1} parent=35 // pred_fallthru
          _
      $region36: #{tpu_custom_call.1} parent=5 // pred_fallthru
        _
    $region6: #{tpu_custom_call.1} parent=1 // loop_footer
      %s17 = sadd.s32 1, %s13
    $region7: #{tpu_custom_call.1} parent=1 // loop_footer_branch
      %12 = sbr.rel target = $region3
    $region8: #{tpu_custom_call.1} parent=1 // loop_exit
      _
    %259 = vsyncpa [#allocation3], 1
    %s260 = scalar_lea.sflag [#allocation3], 1
    %261 = vsyncpa %s260, 1
    %262 = vsyncpa [#allocation4], 1
    %s263 = scalar_lea.sflag [#allocation4], 1
    %264 = vsyncpa %s263, 1

</llo_original>
